<compile_context>
chip_gen: v7x
topology: tpu7x:2x2x1
jax: 0.10.0
libtpu: 0.0.40
codegen_flags: <defaults>
</compile_context>

<pallas_src>
import jax
import jax.numpy as jnp
from jax import lax
from jax.experimental import pallas as pl
from jax.experimental.pallas import tpu as pltpu


# --------------------------------------------------------------------------- #
# helpers
# --------------------------------------------------------------------------- #

def _pick_tile(dim, pref):
    """Use the preferred tile when it divides `dim`, else the full extent
    (block_shape equal to the array dim is always a valid BlockSpec)."""
    return pref if dim % pref == 0 else dim


# 48 MiB scoped VMEM: below v7x's 64 MiB physical, above the 16/32 MiB defaults.
_VMEM_LIMIT = 48 * 1024 * 1024


# --------------------------------------------------------------------------- #
# tiled matmul:  out = x @ w.T    (w stored as (N, K); no W.T copy in HBM)
# --------------------------------------------------------------------------- #

def _matmul_nt_kernel(x_ref, w_ref, o_ref, acc_ref):
    @pl.when(pl.program_id(2) == 0)
    def _():
        acc_ref[...] = jnp.zeros_like(acc_ref)

    acc_ref[...] += lax.dot_general(
        x_ref[...], w_ref[...],
        dimension_numbers=(((1,), (1,)), ((), ())),      # contract K with K
        preferred_element_type=jnp.float32)

    @pl.when(pl.program_id(2) == pl.num_programs(2) - 1)
    def _():
        o_ref[...] = acc_ref[...].astype(o_ref.dtype)


def pallas_matmul_nt(x, w, *, tm=128, tn=128, tk=256):
    """x: (M, K), w: (N, K) -> x @ w.T : (M, N) f32."""
    M, K = x.shape
    N, K2 = w.shape
    assert K == K2
    tm, tn, tk = _pick_tile(M, tm), _pick_tile(N, tn), _pick_tile(K, tk)
    grid = (M // tm, N // tn, K // tk)
    return pl.pallas_call(
        _matmul_nt_kernel,
        out_shape=jax.ShapeDtypeStruct((M, N), jnp.float32),
        grid_spec=pltpu.PrefetchScalarGridSpec(
            num_scalar_prefetch=0,
            grid=grid,
            in_specs=[pl.BlockSpec((tm, tk), lambda i, j, k: (i, k)),
                      pl.BlockSpec((tn, tk), lambda i, j, k: (j, k))],
            out_specs=pl.BlockSpec((tm, tn), lambda i, j, k: (i, j)),
            scratch_shapes=[pltpu.VMEM((tm, tn), jnp.float32)]),
        compiler_params=pltpu.CompilerParams(
            dimension_semantics=("parallel", "parallel", "arbitrary"),
            vmem_limit_bytes=_VMEM_LIMIT),
    )(x.astype(jnp.float32), w.astype(jnp.float32))


# --------------------------------------------------------------------------- #
# GAT attention kernel (one relation), tiled over destination rows
# --------------------------------------------------------------------------- #

def _make_gat_attn_kernel(num_heads, head_dim, neg_slope=0.2):
    H, F = num_heads, head_dim

    def kernel(zd_ref, zs_ref, alT_ref, arT_ref, b_ref, adj_ref, out_ref):
        # zd_ref : (T, H*F)  projected features of this dst tile
        # zs_ref : (Ns, H*F) projected features of all src nodes (grid-resident)
        # alT/arT: (H, H*F)  block-expanded attn_l / attn_r vectors
        # b_ref  : (1, H*F)  bias, heads concatenated
        # adj_ref: (T, Ns)   int8 adjacency mask, adj[dst, src]
        # out_ref: (T, H*F)  lane-dense output (heads concatenated on lanes)
        zd = zd_ref[...]
        zs = zs_ref[...]
        mask = adj_ref[...] > 0

        # Hoisted out of the head loop: one MXU matmul each instead of H
        # lane-axis reductions.
        #   er[t, h] = sum_f zd[t, h*F+f] * attn_r[h, f]
        #   el[h, s] = sum_f zs[s, h*F+f] * attn_l[h, f]
        er = lax.dot_general(zd, arT_ref[...],
                             dimension_numbers=(((1,), (1,)), ((), ())),
                             preferred_element_type=jnp.float32)       # (T, H)
        elT = lax.dot_general(alT_ref[...], zs,
                              dimension_numbers=(((1,), (1,)), ((), ())),
                              preferred_element_type=jnp.float32)      # (H, Ns)

        outs = []
        # H is small (2-16): static unroll keeps each head's (T, Ns)
        # intermediates short-lived and lets the final store be one
        # lane-dense (T, H*F) slab instead of H masked F-wide stores.
        for h in range(H):
            e = er[:, h:h + 1] + elT[h:h + 1, :]                       # (T, Ns)
            e = jnp.where(e > 0, e, neg_slope * e)                     # leaky_relu
            e = jnp.where(mask, e, -1e30)                              # mask non-edges
            m = jnp.max(e, axis=-1, keepdims=True)
            p = jnp.where(mask, jnp.exp(e - m), 0.0)
            s = jnp.sum(p, axis=-1, keepdims=True)
            # fold 1/s into the (T, F) result (EUP reciprocal), not the (T, Ns)
            # probability matrix.
            inv = pl.reciprocal(jnp.maximum(s, 1e-20), approx=True)
            o_h = jnp.dot(p, zs[:, h * F:(h + 1) * F],
                          preferred_element_type=jnp.float32) * inv    # (T, F)
            outs.append(o_h)

        out_ref[...] = jnp.concatenate(outs, axis=-1) + b_ref[...]

    return kernel


def pallas_gat_attention(z, alT, arT, bias_flat, adj, *, tile_dst=256):
    """One dglnn.GATConv message-passing step on one relation.

    z         : (N, H*F) fc-projected features (src node set == dst node set)
    alT / arT : (H, H*F) block-expanded attention vectors
    bias_flat : (H*F,)   bias, heads concatenated
    adj       : (N, N)   int8 adjacency, adj[dst, src] != 0 for edge src -> dst
    returns   : (N, H*F) attention output, heads concatenated on the last axis
    """
    N, HF = z.shape
    H = alT.shape[0]
    F = HF // H
    T = _pick_tile(N, tile_dst)
    kernel = _make_gat_attn_kernel(H, F)
    return pl.pallas_call(
        kernel,
        out_shape=jax.ShapeDtypeStruct((N, HF), jnp.float32),
        grid_spec=pltpu.PrefetchScalarGridSpec(
            num_scalar_prefetch=0,
            grid=(N // T,),
            in_specs=[
                pl.BlockSpec((T, HF), lambda i: (i, 0)),   # zd: dst tile
                pl.BlockSpec((N, HF), lambda i: (0, 0)),   # zs: resident (fetched once)
                pl.BlockSpec((H, HF), lambda i: (0, 0)),   # alT
                pl.BlockSpec((H, HF), lambda i: (0, 0)),   # arT
                pl.BlockSpec((1, HF), lambda i: (0, 0)),   # bias
                pl.BlockSpec((T, N), lambda i: (i, 0)),    # adj tile (int8)
            ],
            out_specs=pl.BlockSpec((T, HF), lambda i: (i, 0))),
        compiler_params=pltpu.CompilerParams(
            dimension_semantics=("parallel",),
            vmem_limit_bytes=_VMEM_LIMIT),
    )(z.astype(jnp.float32), z.astype(jnp.float32),
      alT.astype(jnp.float32), arT.astype(jnp.float32),
      bias_flat.reshape(1, HF).astype(jnp.float32), adj)


# ------------------------------ model (glue) -------------------------------- #

def init_gatconv_params(key, in_dim, out_dim, heads):
    k1, k2, k3 = jax.random.split(key, 3)
    gain = 1.0 / jnp.sqrt(jnp.float32(in_dim))
    W = jax.random.normal(k1, (heads * out_dim, in_dim), jnp.float32) * gain
    attn_l = jax.random.normal(k2, (heads, out_dim), jnp.float32) * 0.1
    attn_r = jax.random.normal(k3, (heads, out_dim), jnp.float32) * 0.1
    bias = jnp.zeros((heads, out_dim), jnp.float32)   # DGL inits GAT bias to zero
    return dict(W=W, attn_l=attn_l, attn_r=attn_r, bias=bias)


def _expand_attn(a):
    """(H, F) -> (H, H*F) with a[h] placed at columns [h*F, (h+1)*F)."""
    H, F = a.shape
    eye = jnp.eye(H, dtype=a.dtype)
    return (eye[:, :, None] * a[None, :, :]).reshape(H, H * F)


def gatconv_apply(x, params, adj):
    """dglnn.GATConv on one relation.  x: (N, in) -> (N, H*F) head-concat."""
    W, al, ar, b = params["W"], params["attn_l"], params["attn_r"], params["bias"]
    H, F = al.shape
    z = pallas_matmul_nt(x, W)                     # (N, H*F) = x @ W.T (fc, no bias)
    return pallas_gat_attention(z, _expand_attn(al), _expand_attn(ar),
                                b.reshape(H * F), adj)


def rgat_forward(x, adjs, params1, params2, hid_feats, num_heads):
    """RGATConv.forward for a single node type with relation adjacency masks."""
    N = x.shape[0]
    rels = sorted(adjs.keys())
    # conv1: HeteroGraphConv(sum over relations)
    h1 = jnp.zeros((N, num_heads * hid_feats), jnp.float32)
    for r in rels:
        h1 = h1 + gatconv_apply(x, params1[r], adjs[r])
    # relu; already (N, H*hid) head-major == .view(-1, hid_feats * num_heads)
    h = jax.nn.relu(h1)
    # conv2
    out_feats = params2[rels[0]]["attn_l"].shape[1]
    h2 = jnp.zeros((N, num_heads * out_feats), jnp.float32)
    for r in rels:
        h2 = h2 + gatconv_apply(h, params2[r], adjs[r])
    # mean over heads
    return h2.reshape(N, num_heads, out_feats).mean(axis=1)


# -------------------------- pure-JAX reference ------------------------------ #

def _ref_gatconv(x, params, adj):
    W, al, ar, b = params["W"], params["attn_l"], params["attn_r"], params["bias"]
    H, F = al.shape
    z = (x @ W.T).reshape(-1, H, F)
    el = (z * al[None]).sum(-1)                      # (N, H)
    er = (z * ar[None]).sum(-1)                      # (N, H)
    e = er[:, None, :] + el[None, :, :]              # (Nd, Ns, H)
    e = jnp.where(e > 0, e, 0.2 * e)
    mask = (adj > 0)[:, :, None]
    e = jnp.where(mask, e, -jnp.inf)
    alpha = jax.nn.softmax(e, axis=1)
    alpha = jnp.where(mask, alpha, 0.0)
    out = jnp.einsum('dsh,shf->dhf', alpha, z)
    return out + b[None]


def ref_forward(x, adjs, params1, params2, hid_feats, num_heads):
    N = x.shape[0]
    rels = sorted(adjs.keys())
    h1 = jnp.zeros((N, num_heads, hid_feats), jnp.float32)
    for r in rels:
        h1 = h1 + _ref_gatconv(x, params1[r], adjs[r])
    h = jax.nn.relu(h1).reshape(N, hid_feats * num_heads)
    out_feats = params2[rels[0]]["attn_l"].shape[1]
    h2 = jnp.zeros((N, num_heads, out_feats), jnp.float32)
    for r in rels:
        h2 = h2 + _ref_gatconv(h, params2[r], adjs[r])
    return h2.mean(axis=1)


# ---------------------------------- main ------------------------------------ #

if __name__ == "__main__":
    # Small synthetic heterograph: one node type, two relation types.
    N = 16
    in_feats, hid_feats, out_feats, num_heads = 8, 8, 4, 2
    rel_names = ["r0", "r1"]

    key = jax.random.PRNGKey(0)
    kx, ka0, ka1, kp = jax.random.split(key, 4)

    x = jax.random.normal(kx, (N, in_feats), jnp.float32)

    # int8 adjacency masks; self-loops guarantee in-degree >= 1
    eye = jnp.eye(N, dtype=jnp.bool_)
    adj0 = ((jax.random.uniform(ka0, (N, N)) < 0.30) | eye).astype(jnp.int8)
    adj1 = ((jax.random.uniform(ka1, (N, N)) < 0.25) | eye).astype(jnp.int8)
    adjs = {"r0": adj0, "r1": adj1}

    # deterministic parameters (per relation, per layer)
    pkeys = jax.random.split(kp, 2 * len(rel_names))
    params1 = {r: init_gatconv_params(pkeys[i], in_feats, hid_feats, num_heads)
               for i, r in enumerate(rel_names)}
    params2 = {r: init_gatconv_params(pkeys[len(rel_names) + i],
                                      hid_feats * num_heads, out_feats, num_heads)
               for i, r in enumerate(rel_names)}

    out = rgat_forward(x, adjs, params1, params2, hid_feats, num_heads)
    out = jax.block_until_ready(out)

    ref = jax.block_until_ready(
        ref_forward(x, adjs, params1, params2, hid_feats, num_heads))

    assert out.shape == (N, out_feats), out.shape
    # tolerance accounts for the EUP approximate reciprocal in the softmax
    # normalization (folded into the post-matmul scale).
    assert jnp.allclose(out, ref, atol=2e-3, rtol=2e-3), \
        f"max abs err {jnp.max(jnp.abs(out - ref))}"

    print("KERNEL_OK")
</pallas_src>

<mosaic_0001>
module attributes {stable_mosaic.version = 11 : i64} {
  func.func @_matmul_nt_kernel(%arg0: i32, %arg1: i32, %arg2: i32, %arg3: memref<16x8xf32, #tpu.memory_space<vmem>>, %arg4: memref<16x8xf32, #tpu.memory_space<vmem>>, %arg5: memref<16x16xf32, #tpu.memory_space<vmem>>, %arg6: memref<16x16xf32, #tpu.memory_space<vmem>>) attributes {dimension_semantics = [#tpu.dimension_semantics<parallel>, #tpu.dimension_semantics<parallel>, #tpu.dimension_semantics<arbitrary>], iteration_bounds = array<i64: 1, 1, 1>, scalar_prefetch = 0 : i64, scratch_operands = 1 : i64, tpu.core_type = #tpu.core_type<tc>, window_params = [{transform_indices = @transform_0, window_bounds = array<i64: 16, 8>}, {transform_indices = @transform_1, window_bounds = array<i64: 16, 8>}, {transform_indices = @transform_2, window_bounds = array<i64: 16, 16>}]} {
    %c0_i32 = arith.constant 0 : i32
    %0 = arith.cmpi eq, %arg2, %c0_i32 : i32
    %1 = arith.extui %0 : i1 to i32
    %c0_i32_0 = arith.constant 0 : i32
    %2 = arith.cmpi ne, %1, %c0_i32_0 : i32
    scf.if %2 {
      %cst_10 = arith.constant 0.000000e+00 : f32
      %12 = vector.broadcast %cst_10 : f32 to vector<16x16xf32>
      %c0_11 = arith.constant 0 : index
      %c0_12 = arith.constant 0 : index
      %13 = vector.load %arg6[%c0_11, %c0_12] : memref<16x16xf32, #tpu.memory_space<vmem>>, vector<16x16xf32>
      tpu.vector_store %arg6[%c0_11, %c0_12], %12 {strides = array<i32>} : memref<16x16xf32, #tpu.memory_space<vmem>>, vector<16x16xf32>,
    } else {
    }
    %c0 = arith.constant 0 : index
    %c0_1 = arith.constant 0 : index
    %3 = vector.load %arg6[%c0, %c0_1] : memref<16x16xf32, #tpu.memory_space<vmem>>, vector<16x16xf32>
    %c0_2 = arith.constant 0 : index
    %c0_3 = arith.constant 0 : index
    %4 = vector.load %arg3[%c0_2, %c0_3] : memref<16x8xf32, #tpu.memory_space<vmem>>, vector<16x8xf32>
    %c0_4 = arith.constant 0 : index
    %c0_5 = arith.constant 0 : index
    %5 = vector.load %arg4[%c0_4, %c0_5] : memref<16x8xf32, #tpu.memory_space<vmem>>, vector<16x8xf32>
    %cst = arith.constant dense<0.000000e+00> : vector<16x16xf32>
    %6 = tpu.matmul %4, %5, %cst {dimension_numbers = #tpu.dot_dimension_numbers<[1], [1], [0], [0], [0, 0, 1, 0], [], []>} : vector<16x8xf32>, vector<16x8xf32>, vector<16x16xf32> -> vector<16x16xf32>
    %7 = arith.addf %3, %6 : vector<16x16xf32>
    %c0_6 = arith.constant 0 : index
    %c0_7 = arith.constant 0 : index
    %8 = vector.load %arg6[%c0_6, %c0_7] : memref<16x16xf32, #tpu.memory_space<vmem>>, vector<16x16xf32>
    tpu.vector_store %arg6[%c0_6, %c0_7], %7 {strides = array<i32>} : memref<16x16xf32, #tpu.memory_space<vmem>>, vector<16x16xf32>,
    %c0_i32_8 = arith.constant 0 : i32
    %9 = arith.cmpi eq, %arg2, %c0_i32_8 : i32
    %10 = arith.extui %9 : i1 to i32
    %c0_i32_9 = arith.constant 0 : i32
    %11 = arith.cmpi ne, %10, %c0_i32_9 : i32
    scf.if %11 {
      %c0_10 = arith.constant 0 : index
      %c0_11 = arith.constant 0 : index
      %12 = vector.load %arg6[%c0_10, %c0_11] : memref<16x16xf32, #tpu.memory_space<vmem>>, vector<16x16xf32>
      %c0_12 = arith.constant 0 : index
      %c0_13 = arith.constant 0 : index
      %13 = vector.load %arg5[%c0_12, %c0_13] : memref<16x16xf32, #tpu.memory_space<vmem>>, vector<16x16xf32>
      tpu.vector_store %arg5[%c0_12, %c0_13], %12 {strides = array<i32>} : memref<16x16xf32, #tpu.memory_space<vmem>>, vector<16x16xf32>,
    } else {
    }
    return
  }
  func.func @transform_0(%arg0: i32, %arg1: i32, %arg2: i32) -> (i32, i32) {
    %c0_i32 = arith.constant 0 : i32
    return %arg0, %arg2 : i32, i32
  }
  func.func @transform_1(%arg0: i32, %arg1: i32, %arg2: i32) -> (i32, i32) {
    %c0_i32 = arith.constant 0 : i32
    return %arg1, %arg2 : i32, i32
  }
  func.func @transform_2(%arg0: i32, %arg1: i32, %arg2: i32) -> (i32, i32) {
    %c0_i32 = arith.constant 0 : i32
    return %arg0, %arg1 : i32, i32
  }
}

</mosaic_0001>

<llo_original>
// kernel: tpu_custom_call.1
$region0: #{tpu_custom_call.1}
  #allocation0 [shape = 'u32[]', space=smem, size = 0x4, offset = 0x4, fixed_abs, tag = 'smem constant byte address 0x4 - core index']
  #allocation1 [shape = 'u32[144,128]{1,0:T(1,128)}', space=vmem, size = 0x12000, scoped, tag = 'internal scratch']
  #allocation2 [shape = 'f32[16,16]{1,0:T(8,128)}', space=vmem, size = 0x2000, scoped, tag = 'scratch operand']
  %s0 = inlined_call_operand.vmem [shape: f32[16,8], index: 0, kind: input, shape index: {}]
  %s1 = inlined_call_operand.vmem [shape: f32[16,8], index: 1, kind: input, shape index: {}]
  %s2 = inlined_call_operand.hbm [shape: f32[16,16], index: 2, kind: output, shape index: {}]
  %s3 = sld [smem:[#allocation0]]
  $region26: #{tpu_custom_call.1} parent=0
    _
  %s5 = ssub.s32 1, %s3
  %s6 = scalar_select 0, %s5, %s3
  $region1: #{tpu_custom_call.1} parent=0
    #allocation3 [shape = 'u8[8192]{0}', space=vmem, size = 0x2000, scoped, tag = 'output window, operand 0, single buffered']
    #allocation4 [shape = 's32[1]{0}', space=sflag, size = 0x4, scoped, tag = 'scoped memory for tpu_custom_call.1']
    %7 = vsyncpa [#allocation4], 0
    // Predicated region
    $region2: #{tpu_custom_call.1} parent=1 // pred_check
      _
    $region3: #{tpu_custom_call.1} parent=1 // pred_check_branch
      %9 = sbr.rel (0) target = $region5
    $region4: #{tpu_custom_call.1} parent=1 // pred_region
      _
    $region5: #{tpu_custom_call.1} parent=1 // pred_fallthru
      _
    // Predicated region
    $region6: #{tpu_custom_call.1} parent=1 // pred_check
      _
    $region7: #{tpu_custom_call.1} parent=1 // pred_check_branch
      %11 = sbr.rel (0) target = $region9
    $region8: #{tpu_custom_call.1} parent=1 // pred_region
      _
    $region9: #{tpu_custom_call.1} parent=1 // pred_fallthru
      _
    %p12 = scmp.eq.s32.totalorder 0, 0
    // Predicated region
    $region10: #{tpu_custom_call.1} parent=1 // pred_check
      %p13 = pneg %p12
    $region11: #{tpu_custom_call.1} parent=1 // pred_check_branch
      %15 = sbr.rel (%p13) target = $region13
    $region12: #{tpu_custom_call.1} parent=1 // pred_region
      %vm16 = vcmask 130048
      %17 = vst.msk [vmem:[#allocation2] sm:$0xff] %vm16, 0.0
      %18 = vst.msk [vmem:[#allocation2 + $0x8] sm:$0xff] %vm16, 0.0
    $region13: #{tpu_custom_call.1} parent=1 // pred_fallthru
      _
    %v19 = vld [vmem:[#allocation2] sm:$0xff]
    %v20 = vld [vmem:[#allocation2 + $0x8] sm:$0xff]
    %v21 = vld [vmem:[%s0] sm:$0xff]
    %v22 = vld [vmem:[%s0 + $0x8] sm:$0xff]
    %v23 = vld [vmem:[%s1] sm:$0xff]
    %v24 = vld [vmem:[%s1 + $0x8] sm:$0xff]
    %vm25 = vcmask 64512
    %v27 = vsel %vm25, %v21, 0
    %v30 = vsel %vm25, %v22, 0
    %v33 = vsel %vm25, %v23, 0
    %v36 = vsel %vm25, %v24, 0
    %38 = vmatprep.subr.mxu0 0.0
    %39 = vmatpush1.xpose.msra.mxu0 %v33
    %40 = vmatprep.subr.mxu0 0.0
    %41 = vmatpush1.xpose.msra.mxu0 %v36
    %42 = vmatprep.subr.mxu0 0.0
    %43 = vmatpush1.xpose.msra.mxu0 0.0
    %44 = vmatprep.subr.mxu0 0.0
    %45 = vmatpush1.xpose.msra.mxu0 0.0
    %46 = vmatprep.subr.mxu0 0.0
    %47 = vmatpush1.xpose.msra.mxu0 0.0
    %48 = vmatprep.subr.mxu0 0.0
    %49 = vmatpush1.xpose.msra.mxu0 0.0
    %50 = vmatprep.subr.mxu0 0.0
    %51 = vmatpush1.xpose.msra.mxu0 0.0
    %52 = vmatprep.subr.mxu0 0.0
    %53 = vmatpush1.xpose.msra.mxu0 0.0
    %54 = vmatprep.subr.mxu0 0.0
    %55 = vmatpush1.xpose.msra.mxu0 0.0
    %56 = vmatprep.subr.mxu0 0.0
    %57 = vmatpush1.xpose.msra.mxu0 0.0
    %58 = vmatprep.subr.mxu0 0.0
    %59 = vmatpush1.xpose.msra.mxu0 0.0
    %60 = vmatprep.subr.mxu0 0.0
    %61 = vmatpush1.xpose.msra.mxu0 0.0
    %62 = vmatprep.subr.mxu0 0.0
    %63 = vmatpush1.xpose.msra.mxu0 0.0
    %64 = vmatprep.subr.mxu0 0.0
    %65 = vmatpush1.xpose.msra.mxu0 0.0
    %66 = vmatprep.subr.mxu0 0.0
    %67 = vmatpush1.xpose.msra.mxu0 0.0
    %68 = vmatprep.subr.mxu0 0.0
    %69 = vmatpush1.xpose.msra.mxu0 0.0
    %70 = vmatprep.subr.mxu0 0.0
    %71 = vmatpush1.xpose.msra.mxu0 0.0
    %72 = vmatprep.subr.mxu0 0.0
    %73 = vmatpush1.xpose.msra.mxu0 0.0
    %74 = vmatprep.subr.mxu0 0.0
    %75 = vmatpush1.xpose.msra.mxu0 0.0
    %76 = vmatprep.subr.mxu0 0.0
    %77 = vmatpush1.xpose.msra.mxu0 0.0
    %78 = vmatprep.subr.mxu0 0.0
    %79 = vmatpush1.xpose.msra.mxu0 0.0
    %80 = vmatprep.subr.mxu0 0.0
    %81 = vmatpush1.xpose.msra.mxu0 0.0
    %82 = vmatprep.subr.mxu0 0.0
    %83 = vmatpush1.xpose.msra.mxu0 0.0
    %84 = vmatprep.subr.mxu0 0.0
    %85 = vmatpush1.xpose.msra.mxu0 0.0
    %86 = vmatprep.subr.mxu0 0.0
    %87 = vmatpush1.xpose.msra.mxu0 0.0
    %88 = vmatprep.subr.mxu0 0.0
    %89 = vmatpush1.xpose.msra.mxu0 0.0
    %90 = vmatprep.subr.mxu0 0.0
    %91 = vmatpush1.xpose.msra.mxu0 0.0
    %92 = vmatprep.subr.mxu0 0.0
    %93 = vmatpush1.xpose.msra.mxu0 0.0
    %94 = vmatprep.subr.mxu0 0.0
    %95 = vmatpush1.xpose.msra.mxu0 0.0
    %96 = vmatprep.subr.mxu0 0.0
    %97 = vmatpush1.xpose.msra.mxu0 0.0
    %98 = vmatprep.subr.mxu0 0.0
    %99 = vmatpush1.xpose.msra.mxu0 0.0
    %100 = vmatprep.subr.mxu0 0.0
    %101 = vmatpush1.xpose.msra.mxu0 0.0
    %102 = vmatprep.mubr.f32.mxu0 0.0
    %103 = vmatmul.mubr.f32.gmra.mrb[0].mxu0 %v27
    %v104 = vpop.f32.mrb[0].mxu0
    %v105 = vadd.f32 0.0, %v104
    %v106 = vpop.f32.mrb[0].mxu0
    %107 = vmatprep.mubr.f32.mxu0 0.0
    %108 = vmatmul.mubr.f32.gmra.mrb[0].mxu0 %v30
    %v109 = vpop.f32.mrb[0].mxu0
    %v110 = vadd.f32 0.0, %v109
    %v111 = vpop.f32.mrb[0].mxu0
    %112 = vdwg.mxu0
    %v113 = vadd.f32 %v19, %v105
    %v114 = vadd.f32 %v20, %v110
    %vm115 = vcmask 130048
    %116 = vst.msk [vmem:[#allocation2] sm:$0xff] %vm115, %v113
    %117 = vst.msk [vmem:[#allocation2 + $0x8] sm:$0xff] %vm115, %v114
    // Predicated region
    $region14: #{tpu_custom_call.1} parent=1 // pred_check
      %p118 = pneg %p12
    $region15: #{tpu_custom_call.1} parent=1 // pred_check_branch
      %120 = sbr.rel (%p118) target = $region17
    $region16: #{tpu_custom_call.1} parent=1 // pred_region
      %v121 = vld [vmem:[#allocation2] sm:$0xff]
      %v122 = vld [vmem:[#allocation2 + $0x8] sm:$0xff]
      %123 = vst.msk [vmem:[#allocation3] sm:$0xff] %vm115, %v121
      %124 = vst.msk [vmem:[#allocation3 + $0x8] sm:$0xff] %vm115, %v122
    $region17: #{tpu_custom_call.1} parent=1 // pred_fallthru
      _
    // Predicated region
    $region18: #{tpu_custom_call.1} parent=1 // pred_check
      _
    $region19: #{tpu_custom_call.1} parent=1 // pred_check_branch
      %126 = sbr.rel (0) target = $region21
    $region20: #{tpu_custom_call.1} parent=1 // pred_region
      %s128 = ssub.s32 256, 256
      %129 = vsyncadd [#allocation4], %s128
      %s130 = sshll.u32 [#allocation3], 4
      %s131 = int_to_ptr.vmem [resolvable:$true] %s130
      %136 = dma.vmem_to_hbm [thread:$0]  %s131, 256, %s2, [#allocation4], 128, 128, 8
    $region21: #{tpu_custom_call.1} parent=1 // pred_fallthru
      _
    // Predicated region
    $region22: #{tpu_custom_call.1} parent=1 // pred_check
      _
    $region23: #{tpu_custom_call.1} parent=1 // pred_check_branch
      %138 = sbr.rel (0) target = $region25
    $region24: #{tpu_custom_call.1} parent=1 // pred_region
      %139 = dma.done [#allocation4], 256
    $region25: #{tpu_custom_call.1} parent=1 // pred_fallthru
      _
    %140 = vsyncpa [#allocation4], 1

</llo_original>
